<compile_context>
chip_gen: v5e
topology: v5e:2x2
jax: 0.10.0
libtpu: 0.0.40
codegen_flags: <defaults>
</compile_context>

<pallas_src>
import functools
import math

import jax
import jax.numpy as jnp
from jax.experimental import pallas as pl
from jax.experimental.pallas import tpu as pltpu


def arcface_kernel(label_ref, x_ref, w_ref, out_ref,
                   xn_ref, m_ref, l_ref, t_ref,
                   *, s, cos_m, sin_m, th, mm, tile_c, easy_margin):
    c = pl.program_id(1)
    nc = pl.num_programs(1)

    # ---- per-batch-tile init (class axis is innermost, restarts at 0) ----
    @pl.when(c == 0)
    def _():
        x = x_ref[...].astype(jnp.float32)                        # (TB, D)
        ssq = jnp.sum(x * x, axis=1, keepdims=True)
        # rsqrt on squared norm; 1e-24 matches maximum(norm, 1e-12) semantics.
        xn = x * jax.lax.rsqrt(jnp.maximum(ssq, 1e-24))
        xn_ref[...] = xn.astype(xn_ref.dtype)                     # bf16 resident
        m_ref[...] = jnp.full_like(m_ref, -jnp.inf)               # running max
        l_ref[...] = jnp.zeros_like(l_ref)                        # running sum-exp
        t_ref[...] = jnp.zeros_like(t_ref)                        # target logit

    # ---- cosine = xn @ wn^T : W already normalized + bf16, (1,1) contraction,
    #      no transpose, f32 MXU accumulate ----
    cosine = jax.lax.dot_general(
        xn_ref[...], w_ref[...],
        dimension_numbers=(((1,), (1,)), ((), ())),
        preferred_element_type=jnp.float32)                       # (TB, TC) f32

    # ---- locate the target column of each row inside this class tile ----
    class_ids = c * tile_c + jax.lax.broadcasted_iota(jnp.int32, cosine.shape, 1)
    tmask = (class_ids == label_ref[...]).astype(jnp.float32)     # (TB, TC) 0/1
    hit = jnp.sum(tmask, axis=1, keepdims=True)                   # (TB, 1) 0/1
    cos_t = jnp.sum(tmask * cosine, axis=1, keepdims=True)        # (TB, 1)

    # ---- ArcFace margin on the (TB, 1) target column only ----
    sine_t = jnp.sqrt(jnp.maximum(1.0 - cos_t * cos_t, 0.0))
    phi_t = cos_t * cos_m - sine_t * sin_m
    if easy_margin:
        phi_t = jnp.where(cos_t > 0.0, phi_t, cos_t)
    else:
        phi_t = jnp.where(cos_t > th, phi_t, cos_t - mm)
    tgt_logit = phi_t * s                                         # (TB, 1)
    plain_t = cos_t * s                                           # (TB, 1)

    # ---- online log-sum-exp over plain logits with exact target correction ----
    # phi_t <= cos_t (m in (0, pi)), so the max of the plain logits is a valid
    # stabilizer for the corrected (margin-applied) logits as well.
    logits = cosine * s
    m_prev = m_ref[...]
    m_new = jnp.maximum(m_prev, jnp.max(logits, axis=1, keepdims=True))
    sum_exp = jnp.sum(jnp.exp(logits - m_new), axis=1, keepdims=True)
    corr = hit * (jnp.exp(tgt_logit - m_new) - jnp.exp(plain_t - m_new))
    l_ref[...] = jnp.exp(m_prev - m_new) * l_ref[...] + sum_exp + corr
    m_ref[...] = m_new
    t_ref[...] += hit * tgt_logit

    # ---- finalize: per-row NLL = lse - target_logit, lane-dense row write ----
    @pl.when(c == nc - 1)
    def _():
        out_ref[...] = m_ref[...] + jnp.log(l_ref[...]) - t_ref[...]


def arcface_loss(x, weight, label, *, s=30.0, m=0.5, easy_margin=False,
                 tile_b=128, tile_c=512, mxu_dtype=jnp.bfloat16):
    B, D = x.shape
    C, Dw = weight.shape
    assert D == Dw
    tile_b = min(tile_b, B)
    tile_c = min(tile_c, C)
    assert B % tile_b == 0 and C % tile_c == 0
    assert tile_b == B or tile_b % 8 == 0
    assert tile_c == C or tile_c % 8 == 0
    # TODO(synk): pad D to a multiple of 128 for full lane density if callers
    # pass a non-multiple feature dim (demo uses D=128).

    cos_m = math.cos(m)
    sin_m = math.sin(m)
    th = math.cos(math.pi - m)
    mm = math.sin(math.pi - m) * m

    # ---- W prep (tiny one-off pass): L2-normalize in f32, cast to MXU dtype.
    # Halves HBM bytes on the streamed operand and deletes per-tile renorm.
    w32 = weight.astype(jnp.float32)
    wn = (w32 * jax.lax.rsqrt(
        jnp.maximum(jnp.sum(w32 * w32, axis=1, keepdims=True), 1e-24))
          ).astype(mxu_dtype)

    label2d = label.astype(jnp.int32).reshape(B, 1)
    nb, nct = B // tile_b, C // tile_c

    kernel = functools.partial(
        arcface_kernel, s=s, cos_m=cos_m, sin_m=sin_m, th=th, mm=mm,
        tile_c=tile_c, easy_margin=easy_margin)

    w_bytes = jnp.dtype(mxu_dtype).itemsize
    # VMEM budget: double-buffered W tile + x block + bf16 xn scratch + a few
    # (TB, TC) f32 epilogue temporaries + headroom.  Capped so it also fits
    # v7x's 64 MiB physical VMEM.
    vmem_est = (2 * tile_c * D * w_bytes
                + 2 * tile_b * D * 4
                + tile_b * D * w_bytes
                + 8 * tile_b * max(tile_c, 128) * 4
                + (4 << 20))
    vmem_limit = int(min(max(vmem_est, 32 << 20), 48 << 20))

    cost = pl.CostEstimate(
        flops=2 * B * C * D,
        transcendentals=B * C,
        bytes_accessed=nb * C * D * w_bytes + B * D * 4 + 2 * B * 4)

    per_row_nll = pl.pallas_call(
        kernel,
        out_shape=jax.ShapeDtypeStruct((B, 1), jnp.float32),
        grid_spec=pltpu.PrefetchScalarGridSpec(
            num_scalar_prefetch=0,
            grid=(nb, nct),
            in_specs=[
                # labels: tiny, resident per batch tile
                pl.BlockSpec((tile_b, 1), lambda b, c: (b, 0)),
                # x: resident per batch tile (same block across the class loop)
                pl.BlockSpec((tile_b, D), lambda b, c: (b, 0)),
                # W: pre-normalized bf16, streamed over the class axis
                pl.BlockSpec((tile_c, D), lambda b, c: (c, 0),
                             pipeline_mode=pl.Buffered(2)),
            ],
            out_specs=pl.BlockSpec((tile_b, 1), lambda b, c: (b, 0)),
            scratch_shapes=[
                pltpu.VMEM((tile_b, D), mxu_dtype),   # normalized x (bf16, resident)
                pltpu.VMEM((tile_b, 1), jnp.float32),  # running row max
                pltpu.VMEM((tile_b, 1), jnp.float32),  # running sum-exp
                pltpu.VMEM((tile_b, 1), jnp.float32),  # running target logit
            ]),
        compiler_params=pltpu.CompilerParams(
            dimension_semantics=("parallel", "arbitrary"),
            vmem_limit_bytes=vmem_limit),
        cost_estimate=cost,
    )(label2d, x, wn)

    # mean NLL over the batch (tiny final reduction outside the kernel)
    return jnp.mean(per_row_nll)


if __name__ == "__main__":
    # Small shapes consistent with the module's forward; D is a lane-dense 128
    # and there are 4 class tiles so the streaming / online-LSE path (including
    # the per-row margin correction) is exercised.
    batch, in_features, num_classes = 8, 128, 512

    key = jax.random.PRNGKey(0)
    kx, kw, kl = jax.random.split(key, 3)

    x = jax.random.normal(kx, (batch, in_features), dtype=jnp.float32)

    # Deterministic xavier_uniform_ for a (num_classes, in_features) weight.
    bound = math.sqrt(6.0 / (in_features + num_classes))
    weight = jax.random.uniform(
        kw, (num_classes, in_features), dtype=jnp.float32,
        minval=-bound, maxval=bound)

    label = jax.random.randint(kl, (batch,), 0, num_classes, dtype=jnp.int32)

    loss = arcface_loss(x, weight, label, s=30.0, m=0.5,
                        tile_b=8, tile_c=128, mxu_dtype=jnp.bfloat16)
    jax.block_until_ready(loss)

    # Reference 1: same numerics as the kernel (f32 rsqrt normalize, bf16 MXU
    # inputs, f32 accumulate) -> tight tolerance.
    def ref_matched(x, w, lbl, s=30.0, m=0.5, mxu_dtype=jnp.bfloat16):
        xn = x * jax.lax.rsqrt(jnp.maximum(jnp.sum(x * x, 1, keepdims=True), 1e-24))
        wn = w * jax.lax.rsqrt(jnp.maximum(jnp.sum(w * w, 1, keepdims=True), 1e-24))
        cos = jax.lax.dot_general(
            xn.astype(mxu_dtype), wn.astype(mxu_dtype),
            dimension_numbers=(((1,), (1,)), ((), ())),
            preferred_element_type=jnp.float32)
        sin = jnp.sqrt(jnp.maximum(1.0 - cos * cos, 0.0))
        phi = cos * math.cos(m) - sin * math.sin(m)
        phi = jnp.where(cos > math.cos(math.pi - m), phi,
                        cos - math.sin(math.pi - m) * m)
        oh = jax.nn.one_hot(lbl, cos.shape[1], dtype=jnp.float32)
        out = jnp.where(oh > 0, phi, cos) * s
        lp = jax.nn.log_softmax(out, axis=1)
        return -jnp.mean(jnp.sum(oh * lp, axis=1))

    # Reference 2: the PyTorch module's math verbatim in f32 -> loose tolerance
    # (only difference is the kernel's bf16 MXU inputs).
    def ref_module(x, w, lbl, s=30.0, m=0.5):
        xn = x / jnp.maximum(jnp.linalg.norm(x, axis=1, keepdims=True), 1e-12)
        wn = w / jnp.maximum(jnp.linalg.norm(w, axis=1, keepdims=True), 1e-12)
        cos = xn @ wn.T
        sin = jnp.sqrt(jnp.maximum(1.0 - cos ** 2, 0.0))
        phi = cos * math.cos(m) - sin * math.sin(m)
        phi = jnp.where(cos > math.cos(math.pi - m), phi,
                        cos - math.sin(math.pi - m) * m)
        oh = jax.nn.one_hot(lbl, cos.shape[1], dtype=jnp.float32)
        out = (oh * phi + (1.0 - oh) * cos) * s
        lp = jax.nn.log_softmax(out, axis=1)
        return -jnp.mean(jnp.sum(oh * lp, axis=1))

    assert jnp.allclose(loss, ref_matched(x, weight, label), atol=1e-3, rtol=1e-3)
    assert jnp.allclose(loss, ref_module(x, weight, label), atol=5e-1, rtol=5e-2)
    print("KERNEL_OK")
</pallas_src>

<mosaic_0001>
module attributes {stable_mosaic.version = 11 : i64} {
  func.func @arcface_kernel(%arg0: i32, %arg1: i32, %arg2: memref<8x1xi32, #tpu.memory_space<vmem>>, %arg3: memref<8x128xf32, #tpu.memory_space<vmem>>, %arg4: memref<128x128xbf16, #tpu.memory_space<vmem>>, %arg5: memref<8x1xf32, #tpu.memory_space<vmem>>, %arg6: memref<8x128xbf16, #tpu.memory_space<vmem>>, %arg7: memref<8x1xf32, #tpu.memory_space<vmem>>, %arg8: memref<8x1xf32, #tpu.memory_space<vmem>>, %arg9: memref<8x1xf32, #tpu.memory_space<vmem>>) attributes {dimension_semantics = [#tpu.dimension_semantics<parallel>, #tpu.dimension_semantics<arbitrary>], iteration_bounds = array<i64: 1, 4>, scalar_prefetch = 0 : i64, scratch_operands = 4 : i64, tpu.core_type = #tpu.core_type<tc>, window_params = [{transform_indices = @transform_0, window_bounds = array<i64: 8, 1>}, {transform_indices = @transform_1, window_bounds = array<i64: 8, 128>}, {pipeline_mode = #tpu.pipeline_mode<double_buffered>, transform_indices = @transform_2, window_bounds = array<i64: 128, 128>}, {transform_indices = @transform_3, window_bounds = array<i64: 8, 1>}]} {
    %c0_i32 = arith.constant 0 : i32
    %0 = arith.cmpi eq, %arg1, %c0_i32 : i32
    %1 = arith.extui %0 : i1 to i32
    %c0_i32_0 = arith.constant 0 : i32
    %2 = arith.cmpi ne, %1, %c0_i32_0 : i32
    scf.if %2 {
      %c0_32 = arith.constant 0 : index
      %c0_33 = arith.constant 0 : index
      %72 = vector.load %arg3[%c0_32, %c0_33] : memref<8x128xf32, #tpu.memory_space<vmem>>, vector<8x128xf32>
      %73 = arith.mulf %72, %72 : vector<8x128xf32>
      %cst_34 = arith.constant dense<0.000000e+00> : vector<8xf32>
      %74 = vector.multi_reduction <add>, %73, %cst_34 [1] : vector<8x128xf32> to vector<8xf32>
      %75 = vector.shape_cast %74 : vector<8xf32> to vector<8x1xf32>
      %cst_35 = arith.constant 1.000000e-24 : f32
      %76 = vector.broadcast %cst_35 : f32 to vector<8x1xf32>
      %77 = arith.maximumf %75, %76 : vector<8x1xf32>
      %78 = math.rsqrt %77 : vector<8x1xf32>
      %79 = vector.broadcast %78 : vector<8x1xf32> to vector<8x128xf32>
      %80 = arith.mulf %72, %79 : vector<8x128xf32>
      %81 = arith.truncf %80 : vector<8x128xf32> to vector<8x128xbf16>
      %c0_36 = arith.constant 0 : index
      %c0_37 = arith.constant 0 : index
      %82 = vector.load %arg6[%c0_36, %c0_37] : memref<8x128xbf16, #tpu.memory_space<vmem>>, vector<8x128xbf16>
      tpu.vector_store %arg6[%c0_36, %c0_37], %81 {strides = array<i32>} : memref<8x128xbf16, #tpu.memory_space<vmem>>, vector<8x128xbf16>,
      %cst_38 = arith.constant 0xFF800000 : f32
      %83 = vector.broadcast %cst_38 : f32 to vector<8x1xf32>
      %c0_39 = arith.constant 0 : index
      %c0_40 = arith.constant 0 : index
      %84 = vector.load %arg7[%c0_39, %c0_40] : memref<8x1xf32, #tpu.memory_space<vmem>>, vector<8x1xf32>
      tpu.vector_store %arg7[%c0_39, %c0_40], %83 {strides = array<i32>} : memref<8x1xf32, #tpu.memory_space<vmem>>, vector<8x1xf32>,
      %cst_41 = arith.constant 0.000000e+00 : f32
      %85 = vector.broadcast %cst_41 : f32 to vector<8x1xf32>
      %c0_42 = arith.constant 0 : index
      %c0_43 = arith.constant 0 : index
      %86 = vector.load %arg8[%c0_42, %c0_43] : memref<8x1xf32, #tpu.memory_space<vmem>>, vector<8x1xf32>
      tpu.vector_store %arg8[%c0_42, %c0_43], %85 {strides = array<i32>} : memref<8x1xf32, #tpu.memory_space<vmem>>, vector<8x1xf32>,
      %cst_44 = arith.constant 0.000000e+00 : f32
      %87 = vector.broadcast %cst_44 : f32 to vector<8x1xf32>
      %c0_45 = arith.constant 0 : index
      %c0_46 = arith.constant 0 : index
      %88 = vector.load %arg9[%c0_45, %c0_46] : memref<8x1xf32, #tpu.memory_space<vmem>>, vector<8x1xf32>
      tpu.vector_store %arg9[%c0_45, %c0_46], %87 {strides = array<i32>} : memref<8x1xf32, #tpu.memory_space<vmem>>, vector<8x1xf32>,
    } else {
    }
    %c0 = arith.constant 0 : index
    %c0_1 = arith.constant 0 : index
    %3 = vector.load %arg6[%c0, %c0_1] : memref<8x128xbf16, #tpu.memory_space<vmem>>, vector<8x128xbf16>
    %c0_2 = arith.constant 0 : index
    %c0_3 = arith.constant 0 : index
    %4 = vector.load %arg4[%c0_2, %c0_3] : memref<128x128xbf16, #tpu.memory_space<vmem>>, vector<128x128xbf16>
    %cst = arith.constant dense<0.000000e+00> : vector<8x128xf32>
    %5 = tpu.matmul %3, %4, %cst {dimension_numbers = #tpu.dot_dimension_numbers<[1], [1], [0], [0], [0, 0, 1, 0], [], []>} : vector<8x128xbf16>, vector<128x128xbf16>, vector<8x128xf32> -> vector<8x128xf32>
    %c128_i32 = arith.constant 128 : i32
    %6 = arith.muli %arg1, %c128_i32 : i32
    %7 = tpu.iota {dimensions = array<i32: 1>} : vector<8x128xi32>
    %8 = vector.broadcast %6 : i32 to vector<8x128xi32>
    %9 = arith.addi %8, %7 : vector<8x128xi32>
    %c0_4 = arith.constant 0 : index
    %c0_5 = arith.constant 0 : index
    %10 = vector.load %arg2[%c0_4, %c0_5] : memref<8x1xi32, #tpu.memory_space<vmem>>, vector<8x1xi32>
    %11 = vector.broadcast %10 : vector<8x1xi32> to vector<8x128xi32>
    %12 = arith.cmpi eq, %9, %11 : vector<8x128xi32>
    %13 = arith.extui %12 : vector<8x128xi1> to vector<8x128xi32>
    %14 = arith.sitofp %13 : vector<8x128xi32> to vector<8x128xf32>
    %cst_6 = arith.constant dense<0.000000e+00> : vector<8xf32>
    %15 = vector.multi_reduction <add>, %14, %cst_6 [1] : vector<8x128xf32> to vector<8xf32>
    %16 = vector.shape_cast %15 : vector<8xf32> to vector<8x1xf32>
    %17 = arith.mulf %14, %5 : vector<8x128xf32>
    %cst_7 = arith.constant dense<0.000000e+00> : vector<8xf32>
    %18 = vector.multi_reduction <add>, %17, %cst_7 [1] : vector<8x128xf32> to vector<8xf32>
    %19 = vector.shape_cast %18 : vector<8xf32> to vector<8x1xf32>
    %20 = arith.mulf %19, %19 : vector<8x1xf32>
    %cst_8 = arith.constant 1.000000e+00 : f32
    %21 = vector.broadcast %cst_8 : f32 to vector<8x1xf32>
    %22 = arith.subf %21, %20 : vector<8x1xf32>
    %cst_9 = arith.constant 0.000000e+00 : f32
    %23 = vector.broadcast %cst_9 : f32 to vector<8x1xf32>
    %24 = arith.maximumf %22, %23 : vector<8x1xf32>
    %25 = math.sqrt %24 : vector<8x1xf32>
    %cst_10 = arith.constant 0.87758255 : f32
    %26 = vector.broadcast %cst_10 : f32 to vector<8x1xf32>
    %27 = arith.mulf %19, %26 : vector<8x1xf32>
    %cst_11 = arith.constant 0.47942555 : f32
    %28 = vector.broadcast %cst_11 : f32 to vector<8x1xf32>
    %29 = arith.mulf %25, %28 : vector<8x1xf32>
    %30 = arith.subf %27, %29 : vector<8x1xf32>
    %cst_12 = arith.constant -0.87758255 : f32
    %31 = vector.broadcast %cst_12 : f32 to vector<8x1xf32>
    %32 = arith.cmpf ogt, %19, %31 : vector<8x1xf32>
    %cst_13 = arith.constant 0.239712775 : f32
    %33 = vector.broadcast %cst_13 : f32 to vector<8x1xf32>
    %34 = arith.subf %19, %33 : vector<8x1xf32>
    %35 = arith.select %32, %30, %34 : vector<8x1xi1>, vector<8x1xf32>
    %cst_14 = arith.constant 3.000000e+01 : f32
    %36 = vector.broadcast %cst_14 : f32 to vector<8x1xf32>
    %37 = arith.mulf %35, %36 : vector<8x1xf32>
    %cst_15 = arith.constant 3.000000e+01 : f32
    %38 = vector.broadcast %cst_15 : f32 to vector<8x1xf32>
    %39 = arith.mulf %19, %38 : vector<8x1xf32>
    %cst_16 = arith.constant 3.000000e+01 : f32
    %40 = vector.broadcast %cst_16 : f32 to vector<8x128xf32>
    %41 = arith.mulf %5, %40 : vector<8x128xf32>
    %c0_17 = arith.constant 0 : index
    %c0_18 = arith.constant 0 : index
    %42 = vector.load %arg7[%c0_17, %c0_18] : memref<8x1xf32, #tpu.memory_space<vmem>>, vector<8x1xf32>
    %cst_19 = arith.constant dense<0xFF800000> : vector<8xf32>
    %43 = vector.multi_reduction <maximumf>, %41, %cst_19 [1] : vector<8x128xf32> to vector<8xf32>
    %44 = vector.shape_cast %43 : vector<8xf32> to vector<8x1xf32>
    %45 = arith.maximumf %42, %44 : vector<8x1xf32>
    %46 = vector.broadcast %45 : vector<8x1xf32> to vector<8x128xf32>
    %47 = arith.subf %41, %46 : vector<8x128xf32>
    %48 = math.exp %47 : vector<8x128xf32>
    %cst_20 = arith.constant dense<0.000000e+00> : vector<8xf32>
    %49 = vector.multi_reduction <add>, %48, %cst_20 [1] : vector<8x128xf32> to vector<8xf32>
    %50 = vector.shape_cast %49 : vector<8xf32> to vector<8x1xf32>
    %51 = arith.subf %37, %45 : vector<8x1xf32>
    %52 = math.exp %51 : vector<8x1xf32>
    %53 = arith.subf %39, %45 : vector<8x1xf32>
    %54 = math.exp %53 : vector<8x1xf32>
    %55 = arith.subf %52, %54 : vector<8x1xf32>
    %56 = arith.mulf %16, %55 : vector<8x1xf32>
    %57 = arith.subf %42, %45 : vector<8x1xf32>
    %58 = math.exp %57 : vector<8x1xf32>
    %c0_21 = arith.constant 0 : index
    %c0_22 = arith.constant 0 : index
    %59 = vector.load %arg8[%c0_21, %c0_22] : memref<8x1xf32, #tpu.memory_space<vmem>>, vector<8x1xf32>
    %60 = arith.mulf %58, %59 : vector<8x1xf32>
    %61 = arith.addf %60, %50 : vector<8x1xf32>
    %62 = arith.addf %61, %56 : vector<8x1xf32>
    %c0_23 = arith.constant 0 : index
    %c0_24 = arith.constant 0 : index
    %63 = vector.load %arg8[%c0_23, %c0_24] : memref<8x1xf32, #tpu.memory_space<vmem>>, vector<8x1xf32>
    tpu.vector_store %arg8[%c0_23, %c0_24], %62 {strides = array<i32>} : memref<8x1xf32, #tpu.memory_space<vmem>>, vector<8x1xf32>,
    %c0_25 = arith.constant 0 : index
    %c0_26 = arith.constant 0 : index
    %64 = vector.load %arg7[%c0_25, %c0_26] : memref<8x1xf32, #tpu.memory_space<vmem>>, vector<8x1xf32>
    tpu.vector_store %arg7[%c0_25, %c0_26], %45 {strides = array<i32>} : memref<8x1xf32, #tpu.memory_space<vmem>>, vector<8x1xf32>,
    %c0_27 = arith.constant 0 : index
    %c0_28 = arith.constant 0 : index
    %65 = vector.load %arg9[%c0_27, %c0_28] : memref<8x1xf32, #tpu.memory_space<vmem>>, vector<8x1xf32>
    %66 = arith.mulf %16, %37 : vector<8x1xf32>
    %67 = arith.addf %65, %66 : vector<8x1xf32>
    %c0_29 = arith.constant 0 : index
    %c0_30 = arith.constant 0 : index
    %68 = vector.load %arg9[%c0_29, %c0_30] : memref<8x1xf32, #tpu.memory_space<vmem>>, vector<8x1xf32>
    tpu.vector_store %arg9[%c0_29, %c0_30], %67 {strides = array<i32>} : memref<8x1xf32, #tpu.memory_space<vmem>>, vector<8x1xf32>,
    %c3_i32 = arith.constant 3 : i32
    %69 = arith.cmpi eq, %arg1, %c3_i32 : i32
    %70 = arith.extui %69 : i1 to i32
    %c0_i32_31 = arith.constant 0 : i32
    %71 = arith.cmpi ne, %70, %c0_i32_31 : i32
    scf.if %71 {
      %c0_32 = arith.constant 0 : index
      %c0_33 = arith.constant 0 : index
      %72 = vector.load %arg7[%c0_32, %c0_33] : memref<8x1xf32, #tpu.memory_space<vmem>>, vector<8x1xf32>
      %c0_34 = arith.constant 0 : index
      %c0_35 = arith.constant 0 : index
      %73 = vector.load %arg8[%c0_34, %c0_35] : memref<8x1xf32, #tpu.memory_space<vmem>>, vector<8x1xf32>
      %74 = math.log %73 : vector<8x1xf32>
      %75 = arith.addf %72, %74 : vector<8x1xf32>
      %c0_36 = arith.constant 0 : index
      %c0_37 = arith.constant 0 : index
      %76 = vector.load %arg9[%c0_36, %c0_37] : memref<8x1xf32, #tpu.memory_space<vmem>>, vector<8x1xf32>
      %77 = arith.subf %75, %76 : vector<8x1xf32>
      %c0_38 = arith.constant 0 : index
      %c0_39 = arith.constant 0 : index
      %78 = vector.load %arg5[%c0_38, %c0_39] : memref<8x1xf32, #tpu.memory_space<vmem>>, vector<8x1xf32>
      tpu.vector_store %arg5[%c0_38, %c0_39], %77 {strides = array<i32>} : memref<8x1xf32, #tpu.memory_space<vmem>>, vector<8x1xf32>,
    } else {
    }
    return
  }
  func.func @transform_0(%arg0: i32, %arg1: i32) -> (i32, i32) {
    %c0_i32 = arith.constant 0 : i32
    %c0_i32_0 = arith.constant 0 : i32
    return %arg0, %c0_i32 : i32, i32
  }
  func.func @transform_1(%arg0: i32, %arg1: i32) -> (i32, i32) {
    %c0_i32 = arith.constant 0 : i32
    %c0_i32_0 = arith.constant 0 : i32
    return %arg0, %c0_i32 : i32, i32
  }
  func.func @transform_2(%arg0: i32, %arg1: i32) -> (i32, i32) {
    %c0_i32 = arith.constant 0 : i32
    %c0_i32_0 = arith.constant 0 : i32
    return %arg1, %c0_i32 : i32, i32
  }
  func.func @transform_3(%arg0: i32, %arg1: i32) -> (i32, i32) {
    %c0_i32 = arith.constant 0 : i32
    %c0_i32_0 = arith.constant 0 : i32
    return %arg0, %c0_i32 : i32, i32
  }
}

</mosaic_0001>

<llo_original>
// kernel: tpu_custom_call.1
$region0: #{tpu_custom_call.1}
  #allocation0 [shape = 'u32[]', space=smem, size = 0x4, offset = 0x4, fixed_abs, tag = 'smem constant byte address 0x4 - core index']
  #allocation1 [shape = 'u32[72,128]{1,0:T(1,128)}', space=vmem, size = 0x9000, scoped, tag = 'internal scratch']
  #allocation2 [shape = 'bf16[8,128]{1,0:T(8,128)(2,1)}', space=vmem, size = 0x800, scoped, tag = 'scratch operand']
  #allocation3 [shape = 'f32[8,1]{1,0:T(8,128)}', space=vmem, size = 0x1000, scoped, tag = 'scratch operand']
  #allocation4 [shape = 'f32[8,1]{1,0:T(8,128)}', space=vmem, size = 0x1000, scoped, tag = 'scratch operand']
  #allocation5 [shape = 'f32[8,1]{1,0:T(8,128)}', space=vmem, size = 0x1000, scoped, tag = 'scratch operand']
  %s0 = inlined_call_operand.vmem [shape: s32[8,1], index: 0, kind: input, shape index: {}]
  %s1 = inlined_call_operand.vmem [shape: f32[8,128], index: 1, kind: input, shape index: {}]
  %s2 = inlined_call_operand.hbm [shape: bf16[512,128], index: 2, kind: input, shape index: {}]
  %s3 = inlined_call_operand.vmem [shape: f32[8,1], index: 3, kind: output, shape index: {}]
  %s4 = sld [smem:[#allocation0]]
  $region57: #{tpu_custom_call.1} parent=0
    _
  %s6 = ssub.s32 1, %s4
  %s7 = scalar_select 0, %s6, %s4
  $region1: #{tpu_custom_call.1} parent=0
    #allocation6 [shape = 'u8[65536]{0}', space=vmem, size = 0x10000, scoped, tag = 'input window, operand 2']
    #allocation7 [shape = 's32[2]{0}', space=sflag, size = 0x8, scoped, tag = 'scoped memory for tpu_custom_call.1']
    %8 = vsyncpa [#allocation7], 0
    %s9 = scalar_lea.sflag [#allocation7], 1
    %10 = vsyncpa %s9, 0
    loop: start=0, step=1, limit=6
    $region2: #{tpu_custom_call.1} parent=1 // loop_pre_header
      _
    $region3: #{tpu_custom_call.1} parent=1 // loop_header
      %s12 = sphi 0, %s16
      %p13 = scmp.ge.s32.totalorder %s12, 6
      %s19 = sphi 0, %s31
      %s20 = sphi 0, %s27
      %s21 = sphi 0, %s19
      %s22 = sphi 0, %s20
      %s23 = sphi 0, %s21
      %s24 = sphi 0, %s22
      %s34 = sphi 0, %s36
      %s37 = sphi 0, %s34
      %s38 = sphi 0, %s37
      %s54 = sphi 0, %s38
      %s60 = sphi 0, %s62
      %s63 = sphi 0, %s60
      %s64 = sphi 0, %s63
      %s80 = sphi 0, %s64
      %s86 = sphi 0, %s88
      %s89 = sphi 0, %s86
      %s90 = sphi 0, %s89
      %s106 = sphi 0, %s90
      %s112 = sphi 0, %s114
      %s115 = sphi 0, %s112
      %s116 = sphi 0, %s115
      %s132 = sphi 0, %s116
    $region4: #{tpu_custom_call.1} parent=1 // loop_header_branch
      %15 = sbr.rel (%p13) target = $region8
    $region5: #{tpu_custom_call.1} parent=1 // loop_body
      %s17 = ssub.s32 %s12, 1
      %s18 = ssub.s32 %s12, 2
      %s25 = sadd.s32 1, %s20
      %p26 = scmp.ge.s32.totalorder %s25, 4
      %s27 = scalar_select %p26, 0, %s25
      %s28 = sadd.s32 1, %s19
      %s29 = scalar_select %p26, %s28, %s19
      %p30 = scmp.ge.s32.totalorder %s29, 1
      %s31 = scalar_select %p30, 0, %s29
      %s32 = ssub.s32 %s19, %s31
      %p33 = scmp.eq.s32.totalorder %s32, 0
      %s35 = sadd.s32 %s34, 1
      %s36 = scalar_select %p33, %s34, %s35
      %p39 = pneg %p33
      %p40 = scmp.eq.s32.totalorder %s12, 3
      %p41 = por %p39, %p40
      %p42 = scmp.ne.s32.totalorder %s34, %s37
      %p43 = scmp.eq.s32.totalorder %s12, 0
      %p44 = por %p42, %p43
      %p45 = scmp.ne.s32.totalorder %s34, %s37
      %p46 = scmp.eq.s32.totalorder %s17, 3
      %p47 = por %p45, %p46
      %p48 = scmp.ne.s32.totalorder %s37, %s38
      %p49 = scmp.eq.s32.totalorder %s17, 0
      %p50 = por %p48, %p49
      %p51 = scmp.ne.s32.totalorder %s37, %s38
      %p52 = scmp.eq.s32.totalorder %s18, 3
      %p53 = por %p51, %p52
      %p55 = scmp.ne.s32.totalorder %s38, %s54
      %p56 = scmp.eq.s32.totalorder %s18, 0
      %p57 = por %p55, %p56
      %s58 = ssub.s32 %s19, %s31
      %p59 = scmp.eq.s32.totalorder %s58, 0
      %s61 = sadd.s32 %s60, 1
      %s62 = scalar_select %p59, %s60, %s61
      %p65 = pneg %p59
      %p66 = scmp.eq.s32.totalorder %s12, 3
      %p67 = por %p65, %p66
      %p68 = scmp.ne.s32.totalorder %s60, %s63
      %p69 = scmp.eq.s32.totalorder %s12, 0
      %p70 = por %p68, %p69
      %p71 = scmp.ne.s32.totalorder %s60, %s63
      %p72 = scmp.eq.s32.totalorder %s17, 3
      %p73 = por %p71, %p72
      %p74 = scmp.ne.s32.totalorder %s63, %s64
      %p75 = scmp.eq.s32.totalorder %s17, 0
      %p76 = por %p74, %p75
      %p77 = scmp.ne.s32.totalorder %s63, %s64
      %p78 = scmp.eq.s32.totalorder %s18, 3
      %p79 = por %p77, %p78
      %p81 = scmp.ne.s32.totalorder %s64, %s80
      %p82 = scmp.eq.s32.totalorder %s18, 0
      %p83 = por %p81, %p82
      %s84 = ssub.s32 %s20, %s27
      %p85 = scmp.eq.s32.totalorder %s84, 0
      %s87 = sadd.s32 %s86, 1
      %s88 = scalar_select %p85, %s86, %s87
      %p91 = pneg %p85
      %p92 = scmp.eq.s32.totalorder %s12, 3
      %p93 = por %p91, %p92
      %p94 = scmp.ne.s32.totalorder %s86, %s89
      %p95 = scmp.eq.s32.totalorder %s12, 0
      %p96 = por %p94, %p95
      %p97 = scmp.ne.s32.totalorder %s86, %s89
      %p98 = scmp.eq.s32.totalorder %s17, 3
      %p99 = por %p97, %p98
      %p100 = scmp.ne.s32.totalorder %s89, %s90
      %p101 = scmp.eq.s32.totalorder %s17, 0
      %p102 = por %p100, %p101
      %p103 = scmp.ne.s32.totalorder %s89, %s90
      %p104 = scmp.eq.s32.totalorder %s18, 3
      %p105 = por %p103, %p104
      %p107 = scmp.ne.s32.totalorder %s90, %s106
      %p108 = scmp.eq.s32.totalorder %s18, 0
      %p109 = por %p107, %p108
      %s110 = ssub.s32 %s19, %s31
      %p111 = scmp.eq.s32.totalorder %s110, 0
      %s113 = sadd.s32 %s112, 1
      %s114 = scalar_select %p111, %s112, %s113
      %p117 = pneg %p111
      %p118 = scmp.eq.s32.totalorder %s12, 3
      %p119 = por %p117, %p118
      %p120 = scmp.ne.s32.totalorder %s112, %s115
      %p121 = scmp.eq.s32.totalorder %s12, 0
      %p122 = por %p120, %p121
      %p123 = scmp.ne.s32.totalorder %s112, %s115
      %p124 = scmp.eq.s32.totalorder %s17, 3
      %p125 = por %p123, %p124
      %p126 = scmp.ne.s32.totalorder %s115, %s116
      %p127 = scmp.eq.s32.totalorder %s17, 0
      %p128 = por %p126, %p127
      %p129 = scmp.ne.s32.totalorder %s115, %s116
      %p130 = scmp.eq.s32.totalorder %s18, 3
      %p131 = por %p129, %p130
      %p133 = scmp.ne.s32.totalorder %s116, %s132
      %p134 = scmp.eq.s32.totalorder %s18, 0
      %p135 = por %p133, %p134
      %p136 = scmp.le.s32.totalorder 1, %s12
      %p137 = scmp.lt.s32.totalorder %s12, 5
      %p138 = pnand %p136, %p137
      %p139 = pneg %p138
      // Predicated region
      $region9: #{tpu_custom_call.1} parent=5 // pred_check
        _
      $region10: #{tpu_custom_call.1} parent=5 // pred_check_branch
        %141 = sbr.rel (%p138) target = $region12
      $region11: #{tpu_custom_call.1} parent=5 // pred_region
        %s142 = ssub.s32 %s12, 1
        // Predicated region
        $region13: #{tpu_custom_call.1} parent=11 // pred_check
          %p143 = pneg %p50
        $region14: #{tpu_custom_call.1} parent=11 // pred_check_branch
          %145 = sbr.rel (%p143) target = $region16
        $region15: #{tpu_custom_call.1} parent=11 // pred_region
          %p146 = scmp.lt.s32.totalorder %s21, 0
          %s147 = scalar_select %p146, %s21, 0
          %s148 = smul.addr %s147, 8
          %s149 = scalar_lea.vmem %s0, %s148
        $region16: #{tpu_custom_call.1} parent=11 // pred_fallthru
          _
        // Predicated region
        $region17: #{tpu_custom_call.1} parent=11 // pred_check
          %p150 = pneg %p76
        $region18: #{tpu_custom_call.1} parent=11 // pred_check_branch
          %152 = sbr.rel (%p150) target = $region20
        $region19: #{tpu_custom_call.1} parent=11 // pred_region
          %p153 = scmp.lt.s32.totalorder %s21, 0
          %s154 = scalar_select %p153, %s21, 0
          %s155 = smul.addr %s154, 8
          %s156 = scalar_lea.vmem %s1, %s155
        $region20: #{tpu_custom_call.1} parent=11 // pred_fallthru
          _
      $region12: #{tpu_custom_call.1} parent=5 // pred_fallthru
        _
      %p157 = scmp.lt.s32.totalorder %s12, 4
      // Predicated region
      $region21: #{tpu_custom_call.1} parent=5 // pred_check
        %p158 = pneg %p157
      $region22: #{tpu_custom_call.1} parent=5 // pred_check_branch
        %160 = sbr.rel (%p158) target = $region24
      $region23: #{tpu_custom_call.1} parent=5 // pred_region
        // Predicated region
        $region25: #{tpu_custom_call.1} parent=23 // pred_check
          %p161 = pneg %p96
        $region26: #{tpu_custom_call.1} parent=23 // pred_check_branch
          %163 = sbr.rel (%p161) target = $region28
        $region27: #{tpu_custom_call.1} parent=23 // pred_region
          %s164 = sand.u32 %s86, 1
          %s165 = scalar_lea.sflag [#allocation7], %s164
          %s166 = sand.u32 %s86, 1
          %s167 = smul.addr %s166, 64
          %s168 = scalar_lea.vmem [#allocation6], %s167
          %s169 = smul.u32 16, %s20
          %171 = vsyncadd %s165, 0
          %s172 = smul.addr %s169, 4
          %s173 = scalar_lea.hbm %s2, %s172
          %s174 = sshll.u32 %s173, 4
          %s175 = int_to_ptr.hbm [resolvable:$true] %s174
          %s176 = sshll.u32 %s168, 4
          %s177 = int_to_ptr.vmem [resolvable:$true] %s176
          %182 = dma.hbm_to_vmem [thread:$0]  %s175, 1024, %s177, %s165, 64, 64, 4
        $region28: #{tpu_custom_call.1} parent=23 // pred_fallthru
          _
      $region24: #{tpu_custom_call.1} parent=5 // pred_fallthru
        _
      %p183 = scmp.le.s32.totalorder 1, %s12
      %p184 = scmp.lt.s32.totalorder %s12, 5
      %p185 = pnand %p183, %p184
      %p186 = pneg %p185
      // Predicated region
      $region29: #{tpu_custom_call.1} parent=5 // pred_check
        _
      $region30: #{tpu_custom_call.1} parent=5 // pred_check_branch
        %188 = sbr.rel (%p185) target = $region32
      $region31: #{tpu_custom_call.1} parent=5 // pred_region
        %s189 = ssub.s32 %s12, 1
        %s190 = sand.u32 %s89, 1
        %s191 = scalar_lea.sflag [#allocation7], %s190
        %s192 = sand.u32 %s89, 1
        %s193 = smul.addr %s192, 64
        %s194 = scalar_lea.vmem [#allocation6], %s193
        // Predicated region
        $region33: #{tpu_custom_call.1} parent=31 // pred_check
          %p195 = pneg %p102
        $region34: #{tpu_custom_call.1} parent=31 // pred_check_branch
          %197 = sbr.rel (%p195) target = $region36
        $region35: #{tpu_custom_call.1} parent=31 // pred_region
          %199 = dma.done %s191, 1024
        $region36: #{tpu_custom_call.1} parent=31 // pred_fallthru
          _
        %p200 = scmp.lt.s32.totalorder %s21, 0
        %s201 = scalar_select %p200, %s21, 0
        %s202 = smul.addr %s201, 8
        %s203 = scalar_lea.vmem %s0, %s202
        %p204 = pneg %p50
        %p205 = pneg %p47
        %p206 = scmp.lt.s32.totalorder %s21, 0
        %s207 = scalar_select %p206, %s21, 0
        %s208 = smul.addr %s207, 8
        %s209 = scalar_lea.vmem %s1, %s208
        %p210 = pneg %p76
        %p211 = pneg %p73
        %s212 = sand.u32 %s89, 1
        %s213 = scalar_lea.sflag [#allocation7], %s212
        %s214 = sand.u32 %s89, 1
        %s215 = smul.addr %s214, 64
        %s216 = scalar_lea.vmem [#allocation6], %s215
        %p217 = pneg %p102
        %p218 = pneg %p99
        %p219 = pneg %p128
        %p220 = pneg %p125
        %p221 = scmp.lt.s32.totalorder %s21, 0
        %s222 = scalar_select %p221, %s21, 0
        %s223 = smul.addr %s222, 8
        %s224 = scalar_lea.vmem %s3, %s223
        %p225 = scmp.lt.s32.totalorder %s21, 0
        %s226 = scalar_select %p225, %s21, 0
        %s227 = smul.addr %s226, 8
        %s228 = scalar_lea.vmem %s0, %s227
        %p229 = scmp.lt.s32.totalorder %s21, 0
        %s230 = scalar_select %p229, %s21, 0
        %s231 = smul.addr %s230, 8
        %s232 = scalar_lea.vmem %s1, %s231
        %s233 = smul.u32 16, %s22
        %p234 = scmp.lt.s32.totalorder %s21, 0
        %s235 = scalar_select %p234, %s21, 0
        %s236 = smul.addr %s235, 8
        %s237 = scalar_lea.vmem %s3, %s236
        %p238 = scmp.eq.s32.totalorder %s22, 0
        // Predicated region
        $region37: #{tpu_custom_call.1} parent=31 // pred_check
          %p239 = pneg %p238
        $region38: #{tpu_custom_call.1} parent=31 // pred_check_branch
          %241 = sbr.rel (%p239) target = $region40
        $region39: #{tpu_custom_call.1} parent=31 // pred_region
          %v242 = vld [vmem:[%s232] sm:$0xff]
          %v243 = vmul.f32 %v242, %v242
          %244 = vadd.xlane.f32.xlu0 %v243
          %v245 = vpop.xlane.xlu0 %244
          %v246 = vmax.f32 %v245, 1e-24
          %v247 = vrsqrt.pop %v246
          %v248 = vmul.f32 %v247, %v246
          %v249 = vmul.f32 %v248, %v247
          %v250 = vmul.f32 0.5, %v249
          %v251 = vsub.f32 1.5, %v250
          %v252 = vmul.f32 %v247, %v251
          %vm253 = vweird.f32 %v246
          %vm254 = vweird.f32 %v247
          %vm255 = vmor %vm253, %vm254
          %v256 = vsel %vm255, %v247, %v252
          %v257 = vmul.f32 %v242, %v256
          %v258 = vpack.c.bf16 %v257, %v257
          %259 = vst [vmem:[#allocation2] sm:$0xf] %v258
          %vm260 = vcmask 7168
          %261 = vst.msk [vmem:[#allocation3] sm:$0xff] %vm260, -inf
          %262 = vst.msk [vmem:[#allocation4] sm:$0xff] %vm260, 0.0
          %263 = vst.msk [vmem:[#allocation5] sm:$0xff] %vm260, 0.0
        $region40: #{tpu_custom_call.1} parent=31 // pred_fallthru
          _
        %v264 = vld [vmem:[#allocation2] sm:$0xf]
        %v265 = vld [vmem:[%s194] sm:$0xf]
        %v266 = vld [vmem:[%s194 + $0x4] sm:$0xf]
        %v267 = vld [vmem:[%s194 + $0x8] sm:$0xf]
        %v268 = vld [vmem:[%s194 + $0xc] sm:$0xf]
        %v269 = vld [vmem:[%s194 + $0x10] sm:$0xf]
        %v270 = vld [vmem:[%s194 + $0x14] sm:$0xf]
        %v271 = vld [vmem:[%s194 + $0x18] sm:$0xf]
        %v272 = vld [vmem:[%s194 + $0x1c] sm:$0xf]
        %v273 = vld [vmem:[%s194 + $0x20] sm:$0xf]
        %v274 = vld [vmem:[%s194 + $0x24] sm:$0xf]
        %v275 = vld [vmem:[%s194 + $0x28] sm:$0xf]
        %v276 = vld [vmem:[%s194 + $0x2c] sm:$0xf]
        %v277 = vld [vmem:[%s194 + $0x30] sm:$0xf]
        %v278 = vld [vmem:[%s194 + $0x34] sm:$0xf]
        %v279 = vld [vmem:[%s194 + $0x38] sm:$0xf]
        %v280 = vld [vmem:[%s194 + $0x3c] sm:$0xf]
        %v297 = vunpack.c.l.b16 %v265
        %v298 = vunpack.c.l.b16 %v266
        %v299 = vunpack.c.l.b16 %v267
        %v300 = vunpack.c.l.b16 %v268
        %v301 = vunpack.c.l.b16 %v269
        %v302 = vunpack.c.l.b16 %v270
        %v303 = vunpack.c.l.b16 %v271
        %v304 = vunpack.c.l.b16 %v272
        %v305 = vunpack.c.l.b16 %v273
        %v306 = vunpack.c.l.b16 %v274
        %v307 = vunpack.c.l.b16 %v275
        %v308 = vunpack.c.l.b16 %v276
        %v309 = vunpack.c.l.b16 %v277
        %v310 = vunpack.c.l.b16 %v278
        %v311 = vunpack.c.l.b16 %v279
        %v312 = vunpack.c.l.b16 %v280
        %v313 = vpack.c.b16 %v298, %v297
        %v314 = vpack.c.b16 %v300, %v299
        %v315 = vpack.c.b16 %v302, %v301
        %v316 = vpack.c.b16 %v304, %v303
        %v317 = vpack.c.b16 %v306, %v305
        %v318 = vpack.c.b16 %v308, %v307
        %v319 = vpack.c.b16 %v310, %v309
        %v320 = vpack.c.b16 %v312, %v311
        %329 = vmatpush.bf16.xpose.msra.mxu0 %v320
        %330 = vmatpush.bf16.xpose.msra.mxu0 %v319
        %331 = vmatpush.bf16.xpose.msra.mxu0 %v318
        %332 = vmatpush.bf16.xpose.msra.mxu0 %v317
        %333 = vmatpush.bf16.xpose.msra.mxu0 %v316
        %334 = vmatpush.bf16.xpose.msra.mxu0 %v315
        %335 = vmatpush.bf16.xpose.msra.mxu0 %v314
        %336 = vmatpush.bf16.xpose.msra.mxu0 %v313
        %337 = vmatmul.bf16.gmra.mxu0 %v264
        %v338 = vpop.f32.mrf.mxu0
        %v339 = vadd.f32 0.0, %v338
        %v340 = vpop.f32.mrf.mxu0
        %341 = vdwg.mxu0
        %s342 = smul.u32 %s22, 128
        %v343 = vlaneseq
        %v344 = vand.u32 %v343, 127
        %v345 = vstv %s342
        %v346 = vadd.s32 %v345, %v344
        %v347 = vld [vmem:[%s228] sm:$0xff]
        %348 = vset.pattern.permute.xlu0 0
        %349 = vperm.xlu0 %348, %v347
        %v350 = vpop.permute.xlu0 %349
        %vm351 = vcmp.eq.s32.totalorder %v346, %v350
        %v352 = vsel %vm351, 1, 0
        %v353 = vcvt.s32.f32 %v352
        %354 = vadd.xlane.f32.xlu0 %v353
        %v355 = vpop.xlane.xlu0 %354
        %v356 = vmul.f32 %v353, %v339
        %357 = vadd.xlane.f32.xlu0 %v356
        %v358 = vpop.xlane.xlu0 %357
        %v359 = vmul.f32 %v358, %v358
        %v360 = vsub.f32 1.0, %v359
        %v361 = vmax.f32 %v360, 0.0
        %v362 = vrsqrt.pop %v361
        %v363 = vmul.f32 %v362, %v361
        %v364 = vmul.f32 %v363, %v362
        %v365 = vmul.f32 0.5, %v364
        %v366 = vsub.f32 1.5, %v365
        %v367 = vmul.f32 %v362, %v366
        %v368 = vmul.f32 %v361, %v367
        %vm369 = vcmp.eq.f32.partialorder %v361, inf
        %v370 = vsel %vm369, %v361, %v368
        %vm371 = vcmp.eq.f32.partialorder %v361, 0.0
        %v372 = vand.u32 %v361, 2147483648
        %v373 = vsel %vm371, %v372, %v370
        %v374 = vmul.f32 %v358, 0.87758255
        %v375 = vmul.f32 %v373, 0.47942555
        %v376 = vsub.f32 %v374, %v375
        %vm377 = vcmp.gt.f32.partialorder %v358, -0.87758255
        %v378 = vsub.f32 %v358, 0.23971277
        %v379 = vsel %vm377, %v376, %v378
        %v380 = vmul.f32 %v379, 30.0
        %v381 = vmul.f32 %v358, 30.0
        %v382 = vmul.f32 %v339, 30.0
        %v383 = vld [vmem:[#allocation3] sm:$0xff]
        %384 = vmax.xlane.f32.xlu0 %v382
        %v385 = vpop.xlane.xlu0 %384
        %v386 = vmax.f32 %v383, %v385
        %388 = vset.pattern.permute.xlu0 0
        %389 = vperm.xlu0 %388, %v386
        %v390 = vpop.permute.xlu0 %389
        %v392 = vsub.f32 %v382, %v390
        %v393 = vmul.f32 %v392, 1.442695
        %v394 = vpow.pop %v393
        %395 = vadd.xlane.f32.xlu0 %v394
        %v396 = vpop.xlane.xlu0 %395
        %v397 = vsub.f32 %v380, %v386
        %v398 = vmul.f32 %v397, 1.442695
        %v399 = vpow.pop %v398
        %v400 = vsub.f32 %v381, %v386
        %v401 = vmul.f32 %v400, 1.442695
        %v402 = vpow.pop %v401
        %v403 = vsub.f32 %v399, %v402
        %v404 = vmul.f32 %v355, %v403
        %v405 = vsub.f32 %v383, %v386
        %v406 = vmul.f32 %v405, 1.442695
        %v407 = vpow.pop %v406
        %v408 = vld [vmem:[#allocation4] sm:$0xff]
        %v409 = vmul.f32 %v407, %v408
        %v410 = vadd.f32 %v409, %v396
        %v411 = vadd.f32 %v410, %v404
        %vm412 = vcmask 7168
        %413 = vst.msk [vmem:[#allocation4] sm:$0xff] %vm412, %v411
        %414 = vst.msk [vmem:[#allocation3] sm:$0xff] %vm412, %v386
        %v415 = vld [vmem:[#allocation5] sm:$0xff]
        %v416 = vmul.f32 %v355, %v380
        %v417 = vadd.f32 %v415, %v416
        %418 = vst.msk [vmem:[#allocation5] sm:$0xff] %vm412, %v417
        %p419 = scmp.eq.s32.totalorder %s22, 3
        // Predicated region
        $region41: #{tpu_custom_call.1} parent=31 // pred_check
          %p420 = pneg %p419
        $region42: #{tpu_custom_call.1} parent=31 // pred_check_branch
          %422 = sbr.rel (%p420) target = $region44
        $region43: #{tpu_custom_call.1} parent=31 // pred_region
          %v423 = vld [vmem:[#allocation3] sm:$0xff]
          %v424 = vld [vmem:[#allocation4] sm:$0xff]
          %v425 = vlog2.pop %v424
          %v426 = vmul.f32 %v425, 0.6931472
          %v427 = vadd.f32 %v423, %v426
          %v428 = vld [vmem:[#allocation5] sm:$0xff]
          %v429 = vsub.f32 %v427, %v428
          %430 = vst.msk [vmem:[%s237] sm:$0xff] %vm412, %v429
        $region44: #{tpu_custom_call.1} parent=31 // pred_fallthru
          _
        %p431 = scmp.lt.s32.totalorder %s21, 0
        %s432 = scalar_select %p431, %s21, 0
        %s433 = smul.addr %s432, 8
        %s434 = scalar_lea.vmem %s3, %s433
        // Predicated region
        $region45: #{tpu_custom_call.1} parent=31 // pred_check
          %p435 = pneg %p125
        $region46: #{tpu_custom_call.1} parent=31 // pred_check_branch
          %437 = sbr.rel (%p435) target = $region48
        $region47: #{tpu_custom_call.1} parent=31 // pred_region
          _
        $region48: #{tpu_custom_call.1} parent=31 // pred_fallthru
          _
        // Predicated region
        $region49: #{tpu_custom_call.1} parent=31 // pred_check
          %p438 = pneg %p125
        $region50: #{tpu_custom_call.1} parent=31 // pred_check_branch
          %440 = sbr.rel (%p438) target = $region52
        $region51: #{tpu_custom_call.1} parent=31 // pred_region
          %p441 = scmp.lt.s32.totalorder %s21, 0
          %s442 = scalar_select %p441, %s21, 0
          %s443 = smul.addr %s442, 8
          %s444 = scalar_lea.vmem %s3, %s443
        $region52: #{tpu_custom_call.1} parent=31 // pred_fallthru
          _
      $region32: #{tpu_custom_call.1} parent=5 // pred_fallthru
        _
      %p445 = scmp.le.s32.totalorder 2, %s12
      // Predicated region
      $region53: #{tpu_custom_call.1} parent=5 // pred_check
        %p446 = pneg %p445
      $region54: #{tpu_custom_call.1} parent=5 // pred_check_branch
        %448 = sbr.rel (%p446) target = $region56
      $region55: #{tpu_custom_call.1} parent=5 // pred_region
        %s449 = ssub.s32 %s12, 2
      $region56: #{tpu_custom_call.1} parent=5 // pred_fallthru
        _
    $region6: #{tpu_custom_call.1} parent=1 // loop_footer
      %s16 = sadd.s32 1, %s12
    $region7: #{tpu_custom_call.1} parent=1 // loop_footer_branch
      %11 = sbr.rel target = $region3
    $region8: #{tpu_custom_call.1} parent=1 // loop_exit
      _
    %450 = vsyncpa [#allocation7], 1
    %s451 = scalar_lea.sflag [#allocation7], 1
    %452 = vsyncpa %s451, 1

</llo_original>
